<compile_context>
chip_gen: v7x
topology: tpu7x:2x2x1
jax: 0.10.0
libtpu: 0.0.40
codegen_flags: <defaults>
</compile_context>

<pallas_src>
import jax
import jax.numpy as jnp
from jax import lax
from jax.experimental import pallas as pl
from jax.experimental.pallas import tpu as pltpu

# ---------------- sizes ----------------
B   = 2          # clouds in the batch
N   = 64         # points per cloud (outside level)
N2  = N // 2     # middle level
N4  = N // 4     # inside level
F1  = 32         # outside-encoder feature width
F2  = 64         # middle-encoder feature width
LAT = 128        # lat_size
BP4 = B * N4     # decoder "seed" points across the whole batch (32)

# ------------- packed parameter slab layout (f32, [R_SLAB, 256]) -------------
SLAB_W  = 2 * LAT          # 256 lanes
OFF_W1  = 0                # rows +0:3  = w1 [3,F1] (point-major), row +3 = b1
OFF_W2  = 8                # rows +0:F1 = w2 [F1,F2],              row +F1 = b2
OFF_W3  = 48               # rows +0:F2 = w3 [F2,LAT],             row +F2 = b3
OFF_WMV = 120              # rows +0:LAT = [wmu|wvar] [LAT,2LAT],  row +LAT = [bmu|bvar]
OFF_Q   = 256              # rows +0:N4 = q [N4,LAT]
OFF_WD  = 272              # feature-major [wdf|wdp]^T, bias column at lane LAT
WD_ROWS = 72               #   +0:F2 = wdf^T, +F2:F2+3 = wdp^T (rest zero-pad)
OFF_WM  = 344              # feature-major [wmf|wmp1|wmp2]^T, bias column at lane F2
WM_ROWS = 48               #   +0:F1 = wmf^T, +F1:F1+3 = wmp1^T, +F1+8:F1+11 = wmp2^T
OFF_WO  = 392              # feature-major [wop1|wop2]^T
WO_ROWS = 16               #   +0:3 = wop1^T, +8:11 = wop2^T
R_SLAB  = OFF_WO + WO_ROWS  # 408

OUT_ROWS = 8               # packed output slab [8, 256]


# ---------------- kernel ----------------
def vae_kernel(pos_ref, eps_ref, slab_ref, out_ref):
    f32, bf16 = jnp.float32, jnp.bfloat16

    # -- static slices of the packed parameter slab (sub-window VMEM loads) --
    wb1 = slab_ref[OFF_W1:OFF_W1 + 4, 0:F1]                        # [4, F1]   f32
    w2  = slab_ref[OFF_W2:OFF_W2 + F1, 0:F2].astype(bf16)          # [F1, F2]
    b2  = slab_ref[OFF_W2 + F1:OFF_W2 + F1 + 1, 0:F2]              # [1, F2]
    w3  = slab_ref[OFF_W3:OFF_W3 + F2, 0:LAT].astype(bf16)         # [F2, LAT]
    b3  = slab_ref[OFF_W3 + F2:OFF_W3 + F2 + 1, 0:LAT]             # [1, LAT]
    wmv = slab_ref[OFF_WMV:OFF_WMV + LAT, 0:SLAB_W].astype(bf16)   # [LAT, 2LAT]
    bmv = slab_ref[OFF_WMV + LAT:OFF_WMV + LAT + 1, 0:SLAB_W]      # [1, 2LAT]
    qm  = slab_ref[OFF_Q:OFF_Q + N4, 0:LAT]                        # [N4, LAT] f32
    wdT = slab_ref[OFF_WD:OFF_WD + WD_ROWS, 0:LAT].astype(bf16)    # [72, LAT]
    bdc = slab_ref[OFF_WD:OFF_WD + WD_ROWS, LAT:LAT + 1]           # [72, 1]
    wmT = slab_ref[OFF_WM:OFF_WM + WM_ROWS, 0:F2].astype(bf16)     # [48, F2]
    bmc = slab_ref[OFF_WM:OFF_WM + WM_ROWS, F2:F2 + 1]             # [48, 1]
    woT = slab_ref[OFF_WO:OFF_WO + WO_ROWS, 0:F1].astype(bf16)     # [16, F1]

    # ---- encoders: point-major, whole batch in this single invocation ----
    lats = []
    for b in range(B):                         # B=2, unrolled at trace time
        pos_b = pos_ref[b]                                         # [N, 3]
        # first layer: K=3 contraction on the VPU as 3 broadcast FMAs
        f1 = (pos_b[:, 0:1] * wb1[0:1, :] +
              pos_b[:, 1:2] * wb1[1:2, :] +
              pos_b[:, 2:3] * wb1[2:3, :] + wb1[3:4, :])
        f1 = jnp.maximum(f1, 0.0)                                  # [N, F1]
        f2 = jnp.maximum(
            jnp.dot(f1[:N2].astype(bf16), w2, preferred_element_type=f32) + b2,
            0.0)                                                   # [N2, F2]
        f3 = jnp.maximum(
            jnp.dot(f2[:N4].astype(bf16), w3, preferred_element_type=f32) + b3,
            0.0)                                                   # [N4, LAT]
        lats.append(jnp.max(f3, axis=0, keepdims=True))            # [1, LAT]
    in_feat = jnp.concatenate(lats, axis=0)                        # [B, LAT]

    # ---- VAE head: fused (mu | logvar), lane-dense [B, 2*LAT] ----
    mv = jnp.dot(in_feat.astype(bf16), wmv, preferred_element_type=f32) + bmv
    mean, logvar = mv[:, :LAT], mv[:, LAT:]
    std = jnp.exp(logvar * 0.5)
    x = eps_ref[...] * std + mean                                  # [B, LAT]

    # ---- inside decoder: feature-major from here on (points = lane axis) ----
    h = jnp.concatenate([qm * x[b:b + 1, :] for b in range(B)], axis=0)  # [BP4, LAT]
    # fused (wdf|wdp); the layout flip is folded into the contraction
    # (contract both minor dims) -> no explicit transpose of activations.
    da = lax.dot_general(wdT, h.astype(bf16), (((1,), (1,)), ((), ())),
                         preferred_element_type=f32) + bdc         # [72, BP4]
    in_dec_f = jnp.maximum(da[0:F2], 0.0).astype(bf16)             # [F2, BP4]
    in_dec_p = da[F2:F2 + 3]                                       # [3,  BP4]

    # ---- middle decoder: fused (wmf | wmp1 | wmp2) ----
    ma = jnp.dot(wmT, in_dec_f, preferred_element_type=f32) + bmc  # [48, BP4]
    mid_f = jnp.maximum(ma[0:F1], 0.0).astype(bf16)                # [F1, BP4]
    d1, d2 = ma[F1:F1 + 3], ma[F1 + 8:F1 + 11]                     # [3, BP4] each
    mid_h1 = in_dec_p + d1                                         # first fold
    mid_h2 = in_dec_p + d2                                         # second fold

    # ---- outside decoder: fused (wop1 | wop2) on the UN-duplicated half ----
    ea = jnp.dot(woT, mid_f, preferred_element_type=f32)           # [16, BP4]
    e1, e2 = ea[0:3], ea[8:11]                                     # [3, BP4] each

    # ---- pack everything into one lane-dense [8, 256] output slab ----
    pts = jnp.concatenate(
        [mid_h1 + e1, mid_h2 + e1, mid_h1 + e2, mid_h2 + e2,       # out_dec (4*BP4)
         mid_h1, mid_h2,                                           # mid_dec (2*BP4)
         in_dec_p,                                                 # in_dec  (1*BP4)
         jnp.zeros((3, SLAB_W - 7 * BP4), f32)], axis=1)           # [3, 256]
    out_ref[0:2, :] = mv
    out_ref[2:5, :] = pts
    out_ref[5:OUT_ROWS, :] = jnp.zeros((OUT_ROWS - 5, SLAB_W), f32)


# ---------------- parameter init (deterministic, same as before) ----------------
def init_params(key):
    ks = jax.random.split(key, 16)

    def lin(k, fan_in, shape):
        return jax.random.normal(k, shape, jnp.float32) / jnp.sqrt(float(fan_in))

    z = lambda *s: jnp.zeros(s, jnp.float32)
    return dict(
        w1=lin(ks[0], 3, (3, F1)),        b1=z(1, F1),
        w2=lin(ks[1], F1, (F1, F2)),      b2=z(1, F2),
        w3=lin(ks[2], F2, (F2, LAT)),     b3=z(1, LAT),
        wmu=lin(ks[3], LAT, (LAT, LAT)),  bmu=z(1, LAT),
        wvar=lin(ks[4], LAT, (LAT, LAT)), bvar=z(1, LAT),
        q=lin(ks[5], 1, (N4, LAT)),
        wdf=lin(ks[6], LAT, (LAT, F2)),   bdf=z(1, F2),
        wdp=lin(ks[7], LAT, (LAT, 3)),    bdp=z(1, 3),
        wmf=lin(ks[8], F2, (F2, F1)),     bmf=z(1, F1),
        wmp1=lin(ks[9], F2, (F2, 3)),
        wmp2=lin(ks[10], F2, (F2, 3)),
        wop1=lin(ks[11], F1, (F1, 3)),
        wop2=lin(ks[12], F1, (F1, 3)),
    )


def pack_params(p):
    """Pack all parameters into one f32 [R_SLAB, 256] slab (single input DMA)."""
    s = jnp.zeros((R_SLAB, SLAB_W), jnp.float32)
    s = s.at[OFF_W1:OFF_W1 + 3, :F1].set(p["w1"])
    s = s.at[OFF_W1 + 3, :F1].set(p["b1"][0])
    s = s.at[OFF_W2:OFF_W2 + F1, :F2].set(p["w2"])
    s = s.at[OFF_W2 + F1, :F2].set(p["b2"][0])
    s = s.at[OFF_W3:OFF_W3 + F2, :LAT].set(p["w3"])
    s = s.at[OFF_W3 + F2, :LAT].set(p["b3"][0])
    s = s.at[OFF_WMV:OFF_WMV + LAT, :LAT].set(p["wmu"])
    s = s.at[OFF_WMV:OFF_WMV + LAT, LAT:].set(p["wvar"])
    s = s.at[OFF_WMV + LAT, :LAT].set(p["bmu"][0])
    s = s.at[OFF_WMV + LAT, LAT:].set(p["bvar"][0])
    s = s.at[OFF_Q:OFF_Q + N4, :LAT].set(p["q"])
    s = s.at[OFF_WD:OFF_WD + F2, :LAT].set(p["wdf"].T)
    s = s.at[OFF_WD + F2:OFF_WD + F2 + 3, :LAT].set(p["wdp"].T)
    s = s.at[OFF_WD:OFF_WD + F2, LAT].set(p["bdf"][0])
    s = s.at[OFF_WD + F2:OFF_WD + F2 + 3, LAT].set(p["bdp"][0])
    s = s.at[OFF_WM:OFF_WM + F1, :F2].set(p["wmf"].T)
    s = s.at[OFF_WM + F1:OFF_WM + F1 + 3, :F2].set(p["wmp1"].T)
    s = s.at[OFF_WM + F1 + 8:OFF_WM + F1 + 11, :F2].set(p["wmp2"].T)
    s = s.at[OFF_WM:OFF_WM + F1, F2].set(p["bmf"][0])
    s = s.at[OFF_WO:OFF_WO + 3, :F1].set(p["wop1"].T)
    s = s.at[OFF_WO + 8:OFF_WO + 11, :F1].set(p["wop2"].T)
    return s


# ---------------- wrapper ----------------
def point_cloud_vae_forward(pos_dense, eps, slab):
    """pos_dense: [B, N, 3] f32; eps: [B, LAT] f32 (reparam noise); slab: packed params."""
    flops = 2 * (B * (N * F1 * 3 + N2 * F2 * F1 + N4 * LAT * F2)
                 + B * SLAB_W * LAT
                 + WD_ROWS * BP4 * LAT + WM_ROWS * BP4 * F2 + WO_ROWS * BP4 * F1)
    bytes_accessed = 4 * (R_SLAB * SLAB_W + B * N * 3 + B * LAT + OUT_ROWS * SLAB_W)

    out = pl.pallas_call(
        vae_kernel,
        out_shape=jax.ShapeDtypeStruct((OUT_ROWS, SLAB_W), jnp.float32),
        in_specs=[pl.BlockSpec(memory_space=pltpu.MemorySpace.VMEM)] * 3,
        out_specs=pl.BlockSpec(memory_space=pltpu.MemorySpace.VMEM),
        cost_estimate=pl.CostEstimate(flops=flops, transcendentals=B * LAT,
                                      bytes_accessed=bytes_accessed),
    )(pos_dense, eps, slab)

    # ---- unpack the lane-dense output slab (pure XLA glue) ----
    mean = out[0:2, :LAT]
    variance = out[0:2, LAT:]          # log-variance: std = exp(0.5 * variance)
    prow = out[2:5, :]                                               # [3, 256]
    out_dec = (prow[:, 0:4 * BP4].reshape(3, 4, B, N4)
               .transpose(2, 1, 3, 0).reshape(B, N, 3))
    mid_dec = (prow[:, 4 * BP4:6 * BP4].reshape(3, 2, B, N4)
               .transpose(2, 1, 3, 0).reshape(B, N2, 3))
    in_dec = prow[:, 6 * BP4:7 * BP4].reshape(3, B, N4).transpose(1, 2, 0)

    # encoder point sets are trivial slices of the input -> done here, not in kernel
    out_enc = pos_dense[:, :N2, :]
    mid_enc = pos_dense[:, :N4, :]

    def flat(pts):
        return pts.reshape(-1, 3)

    def batch_vec(n_per):
        return jnp.repeat(jnp.arange(B, dtype=jnp.int32), n_per)

    input_points_list = [flat(pos_dense), flat(out_enc), flat(mid_enc)]
    input_batch_list = [batch_vec(N), batch_vec(N2), batch_vec(N4)]
    output_points_list = [flat(out_dec), flat(mid_dec), flat(in_dec)]
    output_batch_list = [batch_vec(N), batch_vec(N2), batch_vec(N4)]

    return (input_points_list, input_batch_list,
            output_points_list, output_batch_list, mean, variance)


if __name__ == "__main__":
    key = jax.random.PRNGKey(0)
    k_pos, k_eps, k_par = jax.random.split(key, 3)

    pos = jax.random.normal(k_pos, (B, N, 3), jnp.float32)
    eps = jax.random.normal(k_eps, (B, LAT), jnp.float32)   # reparam noise
    slab = pack_params(init_params(k_par))

    result = point_cloud_vae_forward(pos, eps, slab)
    result = jax.block_until_ready(result)

    (in_pts, in_batch, out_pts, out_batch, mean, variance) = result
    assert in_pts[0].shape == (B * N, 3)
    assert in_pts[1].shape == (B * N2, 3)
    assert in_pts[2].shape == (B * N4, 3)
    assert out_pts[0].shape == (B * N, 3)
    assert out_pts[1].shape == (B * N2, 3)
    assert out_pts[2].shape == (B * N4, 3)
    assert in_batch[0].shape == (B * N,) and out_batch[2].shape == (B * N4,)
    assert mean.shape == (B, LAT) and variance.shape == (B, LAT)
    assert all(bool(jnp.all(jnp.isfinite(p))) for p in out_pts)
    assert bool(jnp.all(jnp.isfinite(mean))) and bool(jnp.all(jnp.isfinite(variance)))

    print("KERNEL_OK")
</pallas_src>

<mosaic_0001>
module attributes {stable_mosaic.version = 11 : i64} {
  func.func @vae_kernel(%arg0: memref<2x64x3xf32, #tpu.memory_space<vmem>>, %arg1: memref<2x128xf32, #tpu.memory_space<vmem>>, %arg2: memref<408x256xf32, #tpu.memory_space<vmem>>, %arg3: memref<8x256xf32, #tpu.memory_space<vmem>>) attributes {dimension_semantics = [], scalar_prefetch = 0 : i64, scratch_operands = 0 : i64, tpu.core_type = #tpu.core_type<tc>} {
    %c0 = arith.constant 0 : index
    %c0_0 = arith.constant 0 : index
    %0 = vector.load %arg2[%c0, %c0_0] : memref<408x256xf32, #tpu.memory_space<vmem>>, vector<4x32xf32>
    %c8 = arith.constant 8 : index
    %c0_1 = arith.constant 0 : index
    %1 = vector.load %arg2[%c8, %c0_1] : memref<408x256xf32, #tpu.memory_space<vmem>>, vector<32x64xf32>
    %2 = arith.truncf %1 : vector<32x64xf32> to vector<32x64xbf16>
    %c40 = arith.constant 40 : index
    %c0_2 = arith.constant 0 : index
    %3 = vector.load %arg2[%c40, %c0_2] : memref<408x256xf32, #tpu.memory_space<vmem>>, vector<1x64xf32>
    %c48 = arith.constant 48 : index
    %c0_3 = arith.constant 0 : index
    %4 = vector.load %arg2[%c48, %c0_3] : memref<408x256xf32, #tpu.memory_space<vmem>>, vector<64x128xf32>
    %5 = arith.truncf %4 : vector<64x128xf32> to vector<64x128xbf16>
    %c112 = arith.constant 112 : index
    %c0_4 = arith.constant 0 : index
    %6 = vector.load %arg2[%c112, %c0_4] : memref<408x256xf32, #tpu.memory_space<vmem>>, vector<1x128xf32>
    %c120 = arith.constant 120 : index
    %c0_5 = arith.constant 0 : index
    %7 = vector.load %arg2[%c120, %c0_5] : memref<408x256xf32, #tpu.memory_space<vmem>>, vector<128x256xf32>
    %8 = arith.truncf %7 : vector<128x256xf32> to vector<128x256xbf16>
    %c248 = arith.constant 248 : index
    %c0_6 = arith.constant 0 : index
    %9 = vector.load %arg2[%c248, %c0_6] : memref<408x256xf32, #tpu.memory_space<vmem>>, vector<1x256xf32>
    %c256 = arith.constant 256 : index
    %c0_7 = arith.constant 0 : index
    %10 = vector.load %arg2[%c256, %c0_7] : memref<408x256xf32, #tpu.memory_space<vmem>>, vector<16x128xf32>
    %c272 = arith.constant 272 : index
    %c0_8 = arith.constant 0 : index
    %11 = vector.load %arg2[%c272, %c0_8] : memref<408x256xf32, #tpu.memory_space<vmem>>, vector<72x128xf32>
    %12 = arith.truncf %11 : vector<72x128xf32> to vector<72x128xbf16>
    %c272_9 = arith.constant 272 : index
    %c128 = arith.constant 128 : index
    %13 = vector.load %arg2[%c272_9, %c128] : memref<408x256xf32, #tpu.memory_space<vmem>>, vector<72x1xf32>
    %c344 = arith.constant 344 : index
    %c0_10 = arith.constant 0 : index
    %14 = vector.load %arg2[%c344, %c0_10] : memref<408x256xf32, #tpu.memory_space<vmem>>, vector<48x64xf32>
    %15 = arith.truncf %14 : vector<48x64xf32> to vector<48x64xbf16>
    %c344_11 = arith.constant 344 : index
    %c64 = arith.constant 64 : index
    %16 = vector.load %arg2[%c344_11, %c64] : memref<408x256xf32, #tpu.memory_space<vmem>>, vector<48x1xf32>
    %c392 = arith.constant 392 : index
    %c0_12 = arith.constant 0 : index
    %17 = vector.load %arg2[%c392, %c0_12] : memref<408x256xf32, #tpu.memory_space<vmem>>, vector<16x32xf32>
    %18 = arith.truncf %17 : vector<16x32xf32> to vector<16x32xbf16>
    %c0_13 = arith.constant 0 : index
    %c0_14 = arith.constant 0 : index
    %c0_15 = arith.constant 0 : index
    %19 = vector.load %arg0[%c0_13, %c0_14, %c0_15] : memref<2x64x3xf32, #tpu.memory_space<vmem>>, vector<1x64x3xf32>
    %20 = vector.shape_cast %19 : vector<1x64x3xf32> to vector<64x3xf32>
    %21 = vector.extract_strided_slice %20 {offsets = [0, 0], sizes = [64, 1], strides = [1, 1]} : vector<64x3xf32> to vector<64x1xf32>
    %22 = vector.extract_strided_slice %0 {offsets = [0, 0], sizes = [1, 32], strides = [1, 1]} : vector<4x32xf32> to vector<1x32xf32>
    %23 = vector.broadcast %21 : vector<64x1xf32> to vector<64x32xf32>
    %24 = vector.broadcast %22 : vector<1x32xf32> to vector<64x32xf32>
    %25 = arith.mulf %23, %24 : vector<64x32xf32>
    %26 = vector.extract_strided_slice %20 {offsets = [0, 1], sizes = [64, 1], strides = [1, 1]} : vector<64x3xf32> to vector<64x1xf32>
    %27 = vector.extract_strided_slice %0 {offsets = [1, 0], sizes = [1, 32], strides = [1, 1]} : vector<4x32xf32> to vector<1x32xf32>
    %28 = vector.broadcast %26 : vector<64x1xf32> to vector<64x32xf32>
    %29 = vector.broadcast %27 : vector<1x32xf32> to vector<64x32xf32>
    %30 = arith.mulf %28, %29 : vector<64x32xf32>
    %31 = arith.addf %25, %30 : vector<64x32xf32>
    %32 = vector.extract_strided_slice %20 {offsets = [0, 2], sizes = [64, 1], strides = [1, 1]} : vector<64x3xf32> to vector<64x1xf32>
    %33 = vector.extract_strided_slice %0 {offsets = [2, 0], sizes = [1, 32], strides = [1, 1]} : vector<4x32xf32> to vector<1x32xf32>
    %34 = vector.broadcast %32 : vector<64x1xf32> to vector<64x32xf32>
    %35 = vector.broadcast %33 : vector<1x32xf32> to vector<64x32xf32>
    %36 = arith.mulf %34, %35 : vector<64x32xf32>
    %37 = arith.addf %31, %36 : vector<64x32xf32>
    %38 = vector.extract_strided_slice %0 {offsets = [3, 0], sizes = [1, 32], strides = [1, 1]} : vector<4x32xf32> to vector<1x32xf32>
    %39 = vector.broadcast %38 : vector<1x32xf32> to vector<64x32xf32>
    %40 = arith.addf %37, %39 : vector<64x32xf32>
    %cst = arith.constant 0.000000e+00 : f32
    %41 = vector.broadcast %cst : f32 to vector<64x32xf32>
    %42 = arith.maximumf %40, %41 : vector<64x32xf32>
    %43 = vector.extract_strided_slice %42 {offsets = [0, 0], sizes = [32, 32], strides = [1, 1]} : vector<64x32xf32> to vector<32x32xf32>
    %44 = arith.truncf %43 : vector<32x32xf32> to vector<32x32xbf16>
    %cst_16 = arith.constant dense<0.000000e+00> : vector<32x64xf32>
    %45 = tpu.matmul %44, %2, %cst_16 {dimension_numbers = #tpu.dot_dimension_numbers<[1], [0], [0], [1], [0, 0, 1, 1], [], []>} : vector<32x32xbf16>, vector<32x64xbf16>, vector<32x64xf32> -> vector<32x64xf32>
    %46 = vector.broadcast %3 : vector<1x64xf32> to vector<32x64xf32>
    %47 = arith.addf %45, %46 : vector<32x64xf32>
    %cst_17 = arith.constant 0.000000e+00 : f32
    %48 = vector.broadcast %cst_17 : f32 to vector<32x64xf32>
    %49 = arith.maximumf %47, %48 : vector<32x64xf32>
    %50 = vector.extract_strided_slice %49 {offsets = [0, 0], sizes = [16, 64], strides = [1, 1]} : vector<32x64xf32> to vector<16x64xf32>
    %51 = arith.truncf %50 : vector<16x64xf32> to vector<16x64xbf16>
    %cst_18 = arith.constant dense<0.000000e+00> : vector<16x128xf32>
    %52 = tpu.matmul %51, %5, %cst_18 {dimension_numbers = #tpu.dot_dimension_numbers<[1], [0], [0], [1], [0, 0, 1, 1], [], []>} : vector<16x64xbf16>, vector<64x128xbf16>, vector<16x128xf32> -> vector<16x128xf32>
    %53 = vector.broadcast %6 : vector<1x128xf32> to vector<16x128xf32>
    %54 = arith.addf %52, %53 : vector<16x128xf32>
    %cst_19 = arith.constant 0.000000e+00 : f32
    %55 = vector.broadcast %cst_19 : f32 to vector<16x128xf32>
    %56 = arith.maximumf %54, %55 : vector<16x128xf32>
    %cst_20 = arith.constant dense<0xFF800000> : vector<128xf32>
    %57 = vector.multi_reduction <maximumf>, %56, %cst_20 [0] : vector<16x128xf32> to vector<128xf32>
    %58 = vector.shape_cast %57 : vector<128xf32> to vector<1x128xf32>
    %c1 = arith.constant 1 : index
    %c0_21 = arith.constant 0 : index
    %c0_22 = arith.constant 0 : index
    %59 = vector.load %arg0[%c1, %c0_21, %c0_22] : memref<2x64x3xf32, #tpu.memory_space<vmem>>, vector<1x64x3xf32>
    %60 = vector.shape_cast %59 : vector<1x64x3xf32> to vector<64x3xf32>
    %61 = vector.extract_strided_slice %60 {offsets = [0, 0], sizes = [64, 1], strides = [1, 1]} : vector<64x3xf32> to vector<64x1xf32>
    %62 = vector.extract_strided_slice %0 {offsets = [0, 0], sizes = [1, 32], strides = [1, 1]} : vector<4x32xf32> to vector<1x32xf32>
    %63 = vector.broadcast %61 : vector<64x1xf32> to vector<64x32xf32>
    %64 = vector.broadcast %62 : vector<1x32xf32> to vector<64x32xf32>
    %65 = arith.mulf %63, %64 : vector<64x32xf32>
    %66 = vector.extract_strided_slice %60 {offsets = [0, 1], sizes = [64, 1], strides = [1, 1]} : vector<64x3xf32> to vector<64x1xf32>
    %67 = vector.extract_strided_slice %0 {offsets = [1, 0], sizes = [1, 32], strides = [1, 1]} : vector<4x32xf32> to vector<1x32xf32>
    %68 = vector.broadcast %66 : vector<64x1xf32> to vector<64x32xf32>
    %69 = vector.broadcast %67 : vector<1x32xf32> to vector<64x32xf32>
    %70 = arith.mulf %68, %69 : vector<64x32xf32>
    %71 = arith.addf %65, %70 : vector<64x32xf32>
    %72 = vector.extract_strided_slice %60 {offsets = [0, 2], sizes = [64, 1], strides = [1, 1]} : vector<64x3xf32> to vector<64x1xf32>
    %73 = vector.extract_strided_slice %0 {offsets = [2, 0], sizes = [1, 32], strides = [1, 1]} : vector<4x32xf32> to vector<1x32xf32>
    %74 = vector.broadcast %72 : vector<64x1xf32> to vector<64x32xf32>
    %75 = vector.broadcast %73 : vector<1x32xf32> to vector<64x32xf32>
    %76 = arith.mulf %74, %75 : vector<64x32xf32>
    %77 = arith.addf %71, %76 : vector<64x32xf32>
    %78 = vector.extract_strided_slice %0 {offsets = [3, 0], sizes = [1, 32], strides = [1, 1]} : vector<4x32xf32> to vector<1x32xf32>
    %79 = vector.broadcast %78 : vector<1x32xf32> to vector<64x32xf32>
    %80 = arith.addf %77, %79 : vector<64x32xf32>
    %cst_23 = arith.constant 0.000000e+00 : f32
    %81 = vector.broadcast %cst_23 : f32 to vector<64x32xf32>
    %82 = arith.maximumf %80, %81 : vector<64x32xf32>
    %83 = vector.extract_strided_slice %82 {offsets = [0, 0], sizes = [32, 32], strides = [1, 1]} : vector<64x32xf32> to vector<32x32xf32>
    %84 = arith.truncf %83 : vector<32x32xf32> to vector<32x32xbf16>
    %cst_24 = arith.constant dense<0.000000e+00> : vector<32x64xf32>
    %85 = tpu.matmul %84, %2, %cst_24 {dimension_numbers = #tpu.dot_dimension_numbers<[1], [0], [0], [1], [0, 0, 1, 1], [], []>} : vector<32x32xbf16>, vector<32x64xbf16>, vector<32x64xf32> -> vector<32x64xf32>
    %86 = vector.broadcast %3 : vector<1x64xf32> to vector<32x64xf32>
    %87 = arith.addf %85, %86 : vector<32x64xf32>
    %cst_25 = arith.constant 0.000000e+00 : f32
    %88 = vector.broadcast %cst_25 : f32 to vector<32x64xf32>
    %89 = arith.maximumf %87, %88 : vector<32x64xf32>
    %90 = vector.extract_strided_slice %89 {offsets = [0, 0], sizes = [16, 64], strides = [1, 1]} : vector<32x64xf32> to vector<16x64xf32>
    %91 = arith.truncf %90 : vector<16x64xf32> to vector<16x64xbf16>
    %cst_26 = arith.constant dense<0.000000e+00> : vector<16x128xf32>
    %92 = tpu.matmul %91, %5, %cst_26 {dimension_numbers = #tpu.dot_dimension_numbers<[1], [0], [0], [1], [0, 0, 1, 1], [], []>} : vector<16x64xbf16>, vector<64x128xbf16>, vector<16x128xf32> -> vector<16x128xf32>
    %93 = vector.broadcast %6 : vector<1x128xf32> to vector<16x128xf32>
    %94 = arith.addf %92, %93 : vector<16x128xf32>
    %cst_27 = arith.constant 0.000000e+00 : f32
    %95 = vector.broadcast %cst_27 : f32 to vector<16x128xf32>
    %96 = arith.maximumf %94, %95 : vector<16x128xf32>
    %cst_28 = arith.constant dense<0xFF800000> : vector<128xf32>
    %97 = vector.multi_reduction <maximumf>, %96, %cst_28 [0] : vector<16x128xf32> to vector<128xf32>
    %98 = vector.shape_cast %97 : vector<128xf32> to vector<1x128xf32>
    %99 = tpu.concatenate %58, %98 in 0 : vector<1x128xf32>, vector<1x128xf32> -> vector<2x128xf32>
    %100 = arith.truncf %99 : vector<2x128xf32> to vector<2x128xbf16>
    %cst_29 = arith.constant dense<0.000000e+00> : vector<2x256xf32>
    %101 = tpu.matmul %100, %8, %cst_29 {dimension_numbers = #tpu.dot_dimension_numbers<[1], [0], [0], [1], [0, 0, 1, 1], [], []>} : vector<2x128xbf16>, vector<128x256xbf16>, vector<2x256xf32> -> vector<2x256xf32>
    %102 = vector.broadcast %9 : vector<1x256xf32> to vector<2x256xf32>
    %103 = arith.addf %101, %102 : vector<2x256xf32>
    %104 = vector.extract_strided_slice %103 {offsets = [0, 0], sizes = [2, 128], strides = [1, 1]} : vector<2x256xf32> to vector<2x128xf32>
    %105 = vector.extract_strided_slice %103 {offsets = [0, 128], sizes = [2, 128], strides = [1, 1]} : vector<2x256xf32> to vector<2x128xf32>
    %cst_30 = arith.constant 5.000000e-01 : f32
    %106 = vector.broadcast %cst_30 : f32 to vector<2x128xf32>
    %107 = arith.mulf %105, %106 : vector<2x128xf32>
    %108 = math.exp %107 : vector<2x128xf32>
    %c0_31 = arith.constant 0 : index
    %c0_32 = arith.constant 0 : index
    %109 = vector.load %arg1[%c0_31, %c0_32] : memref<2x128xf32, #tpu.memory_space<vmem>>, vector<2x128xf32>
    %110 = arith.mulf %109, %108 : vector<2x128xf32>
    %111 = arith.addf %110, %104 : vector<2x128xf32>
    %112 = vector.extract_strided_slice %111 {offsets = [0, 0], sizes = [1, 128], strides = [1, 1]} : vector<2x128xf32> to vector<1x128xf32>
    %113 = vector.broadcast %112 : vector<1x128xf32> to vector<16x128xf32>
    %114 = arith.mulf %10, %113 : vector<16x128xf32>
    %115 = vector.extract_strided_slice %111 {offsets = [1, 0], sizes = [1, 128], strides = [1, 1]} : vector<2x128xf32> to vector<1x128xf32>
    %116 = vector.broadcast %115 : vector<1x128xf32> to vector<16x128xf32>
    %117 = arith.mulf %10, %116 : vector<16x128xf32>
    %118 = tpu.concatenate %114, %117 in 0 : vector<16x128xf32>, vector<16x128xf32> -> vector<32x128xf32>
    %119 = arith.truncf %118 : vector<32x128xf32> to vector<32x128xbf16>
    %cst_33 = arith.constant dense<0.000000e+00> : vector<72x32xf32>
    %120 = tpu.matmul %12, %119, %cst_33 {dimension_numbers = #tpu.dot_dimension_numbers<[1], [1], [0], [0], [0, 0, 1, 0], [], []>} : vector<72x128xbf16>, vector<32x128xbf16>, vector<72x32xf32> -> vector<72x32xf32>
    %121 = vector.broadcast %13 : vector<72x1xf32> to vector<72x32xf32>
    %122 = arith.addf %120, %121 : vector<72x32xf32>
    %123 = vector.extract_strided_slice %122 {offsets = [0, 0], sizes = [64, 32], strides = [1, 1]} : vector<72x32xf32> to vector<64x32xf32>
    %cst_34 = arith.constant 0.000000e+00 : f32
    %124 = vector.broadcast %cst_34 : f32 to vector<64x32xf32>
    %125 = arith.maximumf %123, %124 : vector<64x32xf32>
    %126 = arith.truncf %125 : vector<64x32xf32> to vector<64x32xbf16>
    %127 = vector.extract_strided_slice %122 {offsets = [64, 0], sizes = [3, 32], strides = [1, 1]} : vector<72x32xf32> to vector<3x32xf32>
    %cst_35 = arith.constant dense<0.000000e+00> : vector<48x32xf32>
    %128 = tpu.matmul %15, %126, %cst_35 {dimension_numbers = #tpu.dot_dimension_numbers<[1], [0], [0], [1], [0, 0, 1, 1], [], []>} : vector<48x64xbf16>, vector<64x32xbf16>, vector<48x32xf32> -> vector<48x32xf32>
    %129 = vector.broadcast %16 : vector<48x1xf32> to vector<48x32xf32>
    %130 = arith.addf %128, %129 : vector<48x32xf32>
    %131 = vector.extract_strided_slice %130 {offsets = [0, 0], sizes = [32, 32], strides = [1, 1]} : vector<48x32xf32> to vector<32x32xf32>
    %cst_36 = arith.constant 0.000000e+00 : f32
    %132 = vector.broadcast %cst_36 : f32 to vector<32x32xf32>
    %133 = arith.maximumf %131, %132 : vector<32x32xf32>
    %134 = arith.truncf %133 : vector<32x32xf32> to vector<32x32xbf16>
    %135 = vector.extract_strided_slice %130 {offsets = [32, 0], sizes = [3, 32], strides = [1, 1]} : vector<48x32xf32> to vector<3x32xf32>
    %136 = vector.extract_strided_slice %130 {offsets = [40, 0], sizes = [3, 32], strides = [1, 1]} : vector<48x32xf32> to vector<3x32xf32>
    %137 = arith.addf %127, %135 : vector<3x32xf32>
    %138 = arith.addf %127, %136 : vector<3x32xf32>
    %cst_37 = arith.constant dense<0.000000e+00> : vector<16x32xf32>
    %139 = tpu.matmul %18, %134, %cst_37 {dimension_numbers = #tpu.dot_dimension_numbers<[1], [0], [0], [1], [0, 0, 1, 1], [], []>} : vector<16x32xbf16>, vector<32x32xbf16>, vector<16x32xf32> -> vector<16x32xf32>
    %140 = vector.extract_strided_slice %139 {offsets = [0, 0], sizes = [3, 32], strides = [1, 1]} : vector<16x32xf32> to vector<3x32xf32>
    %141 = vector.extract_strided_slice %139 {offsets = [8, 0], sizes = [3, 32], strides = [1, 1]} : vector<16x32xf32> to vector<3x32xf32>
    %142 = arith.addf %137, %140 : vector<3x32xf32>
    %143 = arith.addf %138, %140 : vector<3x32xf32>
    %144 = arith.addf %137, %141 : vector<3x32xf32>
    %145 = arith.addf %138, %141 : vector<3x32xf32>
    %cst_38 = arith.constant 0.000000e+00 : f32
    %146 = vector.broadcast %cst_38 : f32 to vector<3x32xf32>
    %147 = tpu.concatenate %142, %143, %144, %145, %137, %138, %127, %146 in 1 : vector<3x32xf32>, vector<3x32xf32>, vector<3x32xf32>, vector<3x32xf32>, vector<3x32xf32>, vector<3x32xf32>, vector<3x32xf32>, vector<3x32xf32> -> vector<3x256xf32>
    %c0_39 = arith.constant 0 : index
    %c0_40 = arith.constant 0 : index
    %148 = vector.load %arg3[%c0_39, %c0_40] : memref<8x256xf32, #tpu.memory_space<vmem>>, vector<2x256xf32>
    tpu.vector_store %arg3[%c0_39, %c0_40], %103 {strides = array<i32>} : memref<8x256xf32, #tpu.memory_space<vmem>>, vector<2x256xf32>,
    %c2 = arith.constant 2 : index
    %c0_41 = arith.constant 0 : index
    %149 = vector.load %arg3[%c2, %c0_41] : memref<8x256xf32, #tpu.memory_space<vmem>>, vector<3x256xf32>
    tpu.vector_store %arg3[%c2, %c0_41], %147 {strides = array<i32>} : memref<8x256xf32, #tpu.memory_space<vmem>>, vector<3x256xf32>,
    %cst_42 = arith.constant 0.000000e+00 : f32
    %150 = vector.broadcast %cst_42 : f32 to vector<3x256xf32>
    %c5 = arith.constant 5 : index
    %c0_43 = arith.constant 0 : index
    %151 = vector.load %arg3[%c5, %c0_43] : memref<8x256xf32, #tpu.memory_space<vmem>>, vector<3x256xf32>
    tpu.vector_store %arg3[%c5, %c0_43], %150 {strides = array<i32>} : memref<8x256xf32, #tpu.memory_space<vmem>>, vector<3x256xf32>,
    return
  }
}

</mosaic_0001>

<llo_original>
// kernel: tpu_custom_call.1
$region0: #{tpu_custom_call.1}
  #allocation0 [shape = 'u32[]', space=smem, size = 0x4, offset = 0x4, fixed_abs, tag = 'smem constant byte address 0x4 - core index']
  #allocation1 [shape = 'u32[144,128]{1,0:T(1,128)}', space=vmem, size = 0x12000, scoped, tag = 'internal scratch']
  %s0 = inlined_call_operand.vmem [shape: f32[2,64,3], index: 0, kind: input, shape index: {}]
  %s1 = inlined_call_operand.vmem [shape: f32[2,128], index: 1, kind: input, shape index: {}]
  %s2 = inlined_call_operand.hbm [shape: f32[408,256], index: 2, kind: input, shape index: {}]
  %s3 = inlined_call_operand.hbm [shape: f32[8,256], index: 3, kind: output, shape index: {}]
  %s4 = sld [smem:[#allocation0]]
  $region26: #{tpu_custom_call.1} parent=0
    _
  %s6 = ssub.s32 1, %s4
  %s7 = scalar_select 0, %s6, %s4
  $region1: #{tpu_custom_call.1} parent=0
    #allocation2 [shape = 'u8[417792]{0}', space=vmem, size = 0x66000, scoped, tag = 'input window, operand 2, single buffered']
    #allocation3 [shape = 's32[1]{0}', space=sflag, size = 0x4, scoped, tag = 'scoped memory for tpu_custom_call.1']
    #allocation4 [shape = 's32[1]{0}', space=sflag, size = 0x4, scoped, tag = 'scoped memory for tpu_custom_call.1']
    #allocation5 [shape = 'u8[8192]{0}', space=vmem, size = 0x2000, scoped, tag = 'output window, operand 0, single buffered']
    %8 = vsyncpa [#allocation3], 0
    %9 = vsyncpa [#allocation4], 0
    // Predicated region
    $region2: #{tpu_custom_call.1} parent=1 // pred_check
      _
    $region3: #{tpu_custom_call.1} parent=1 // pred_check_branch
      %11 = sbr.rel (0) target = $region5
    $region4: #{tpu_custom_call.1} parent=1 // pred_region
      _
    $region5: #{tpu_custom_call.1} parent=1 // pred_fallthru
      _
    // Predicated region
    $region6: #{tpu_custom_call.1} parent=1 // pred_check
      _
    $region7: #{tpu_custom_call.1} parent=1 // pred_check_branch
      %13 = sbr.rel (0) target = $region9
    $region8: #{tpu_custom_call.1} parent=1 // pred_region
      _
    $region9: #{tpu_custom_call.1} parent=1 // pred_fallthru
      _
    // Predicated region
    $region10: #{tpu_custom_call.1} parent=1 // pred_check
      _
    $region11: #{tpu_custom_call.1} parent=1 // pred_check_branch
      %15 = sbr.rel (0) target = $region13
    $region12: #{tpu_custom_call.1} parent=1 // pred_region
      %s17 = ssub.s32 13056, 13056
      %18 = vsyncadd [#allocation3], %s17
      %s19 = sshll.u32 [#allocation2], 4
      %s20 = int_to_ptr.vmem [resolvable:$true] %s19
      %25 = dma.hbm_to_vmem [thread:$0]  %s2, 13056, %s20, [#allocation3], 256, 256, 16
    $region13: #{tpu_custom_call.1} parent=1 // pred_fallthru
      _
    // Predicated region
    $region14: #{tpu_custom_call.1} parent=1 // pred_check
      _
    $region15: #{tpu_custom_call.1} parent=1 // pred_check_branch
      %27 = sbr.rel (0) target = $region17
    $region16: #{tpu_custom_call.1} parent=1 // pred_region
      %28 = dma.done [#allocation3], 13056
    $region17: #{tpu_custom_call.1} parent=1 // pred_fallthru
      _
    %v30 = vld [vmem:[#allocation2] sm:$0xf]
    %v31 = vld [vmem:[#allocation2 + $0x10] sm:$0xff]
    %v32 = vld [vmem:[#allocation2 + $0x20] sm:$0xff]
    %v33 = vld [vmem:[#allocation2 + $0x30] sm:$0xff]
    %v34 = vld [vmem:[#allocation2 + $0x40] sm:$0xff]
    %v35 = vpack.c.bf16 %v32, %v31
    %v36 = vpack.c.bf16 %v34, %v33
    %v37 = vld [vmem:[#allocation2 + $0x50] ss:$0 sm:$0xff]
    %v38 = vld [vmem:[#allocation2 + $0x60] sm:$0xff]
    %v39 = vld [vmem:[#allocation2 + $0x70] sm:$0xff]
    %v40 = vld [vmem:[#allocation2 + $0x80] sm:$0xff]
    %v41 = vld [vmem:[#allocation2 + $0x90] sm:$0xff]
    %v42 = vld [vmem:[#allocation2 + $0xa0] sm:$0xff]
    %v43 = vld [vmem:[#allocation2 + $0xb0] sm:$0xff]
    %v44 = vld [vmem:[#allocation2 + $0xc0] sm:$0xff]
    %v45 = vld [vmem:[#allocation2 + $0xd0] sm:$0xff]
    %v46 = vpack.c.bf16 %v39, %v38
    %v47 = vpack.c.bf16 %v41, %v40
    %v48 = vpack.c.bf16 %v43, %v42
    %v49 = vpack.c.bf16 %v45, %v44
    %v50 = vld [vmem:[#allocation2 + $0xe0] ss:$0 sm:$0xff]
    %v51 = vld [vmem:[#allocation2 + $0xf0] sm:$0xff]
    %v52 = vld [vmem:[#allocation2 + $0xf8] sm:$0xff]
    %v53 = vld [vmem:[#allocation2 + $0x100] sm:$0xff]
    %v54 = vld [vmem:[#allocation2 + $0x108] sm:$0xff]
    %v55 = vld [vmem:[#allocation2 + $0x110] sm:$0xff]
    %v56 = vld [vmem:[#allocation2 + $0x118] sm:$0xff]
    %v57 = vld [vmem:[#allocation2 + $0x120] sm:$0xff]
    %v58 = vld [vmem:[#allocation2 + $0x128] sm:$0xff]
    %v59 = vld [vmem:[#allocation2 + $0x130] sm:$0xff]
    %v60 = vld [vmem:[#allocation2 + $0x138] sm:$0xff]
    %v61 = vld [vmem:[#allocation2 + $0x140] sm:$0xff]
    %v62 = vld [vmem:[#allocation2 + $0x148] sm:$0xff]
    %v63 = vld [vmem:[#allocation2 + $0x150] sm:$0xff]
    %v64 = vld [vmem:[#allocation2 + $0x158] sm:$0xff]
    %v65 = vld [vmem:[#allocation2 + $0x160] sm:$0xff]
    %v66 = vld [vmem:[#allocation2 + $0x168] sm:$0xff]
    %v67 = vld [vmem:[#allocation2 + $0x170] sm:$0xff]
    %v68 = vld [vmem:[#allocation2 + $0x178] sm:$0xff]
    %v69 = vld [vmem:[#allocation2 + $0x180] sm:$0xff]
    %v70 = vld [vmem:[#allocation2 + $0x188] sm:$0xff]
    %v71 = vld [vmem:[#allocation2 + $0x190] sm:$0xff]
    %v72 = vld [vmem:[#allocation2 + $0x198] sm:$0xff]
    %v73 = vld [vmem:[#allocation2 + $0x1a0] sm:$0xff]
    %v74 = vld [vmem:[#allocation2 + $0x1a8] sm:$0xff]
    %v75 = vld [vmem:[#allocation2 + $0x1b0] sm:$0xff]
    %v76 = vld [vmem:[#allocation2 + $0x1b8] sm:$0xff]
    %v77 = vld [vmem:[#allocation2 + $0x1c0] sm:$0xff]
    %v78 = vld [vmem:[#allocation2 + $0x1c8] sm:$0xff]
    %v79 = vld [vmem:[#allocation2 + $0x1d0] sm:$0xff]
    %v80 = vld [vmem:[#allocation2 + $0x1d8] sm:$0xff]
    %v81 = vld [vmem:[#allocation2 + $0x1e0] sm:$0xff]
    %v82 = vld [vmem:[#allocation2 + $0x1e8] sm:$0xff]
    %v83 = vpack.c.bf16 %v53, %v51
    %v84 = vpack.c.bf16 %v54, %v52
    %v85 = vpack.c.bf16 %v57, %v55
    %v86 = vpack.c.bf16 %v58, %v56
    %v87 = vpack.c.bf16 %v61, %v59
    %v88 = vpack.c.bf16 %v62, %v60
    %v89 = vpack.c.bf16 %v65, %v63
    %v90 = vpack.c.bf16 %v66, %v64
    %v91 = vpack.c.bf16 %v69, %v67
    %v92 = vpack.c.bf16 %v70, %v68
    %v93 = vpack.c.bf16 %v73, %v71
    %v94 = vpack.c.bf16 %v74, %v72
    %v95 = vpack.c.bf16 %v77, %v75
    %v96 = vpack.c.bf16 %v78, %v76
    %v97 = vpack.c.bf16 %v81, %v79
    %v98 = vpack.c.bf16 %v82, %v80
    %s99 = scalar_lea.vmem [#allocation2], 496
    %v100 = vld [vmem:[%s99] ss:$8 sm:$0x3]
    %v101 = vld [vmem:[#allocation2 + $0x200] sm:$0xff]
    %v102 = vld [vmem:[#allocation2 + $0x210] sm:$0xff]
    %v103 = vld [vmem:[#allocation2 + $0x220] sm:$0xff]
    %v104 = vld [vmem:[#allocation2 + $0x230] sm:$0xff]
    %v105 = vld [vmem:[#allocation2 + $0x240] sm:$0xff]
    %v106 = vld [vmem:[#allocation2 + $0x250] sm:$0xff]
    %v107 = vld [vmem:[#allocation2 + $0x260] sm:$0xff]
    %v108 = vld [vmem:[#allocation2 + $0x270] sm:$0xff]
    %v109 = vld [vmem:[#allocation2 + $0x280] sm:$0xff]
    %v110 = vld [vmem:[#allocation2 + $0x290] sm:$0xff]
    %v111 = vld [vmem:[#allocation2 + $0x2a0] sm:$0xff]
    %v112 = vpack.c.bf16 %v104, %v103
    %v113 = vpack.c.bf16 %v106, %v105
    %v114 = vpack.c.bf16 %v108, %v107
    %v115 = vpack.c.bf16 %v110, %v109
    %v116 = vpack.c.bf16 %v111, %v111
    %v117 = vld [vmem:[#allocation2 + $0x228] sm:$0xff]
    %v118 = vld [vmem:[#allocation2 + $0x238] sm:$0xff]
    %v119 = vld [vmem:[#allocation2 + $0x248] sm:$0xff]
    %v120 = vld [vmem:[#allocation2 + $0x258] sm:$0xff]
    %v121 = vld [vmem:[#allocation2 + $0x268] sm:$0xff]
    %v122 = vld [vmem:[#allocation2 + $0x278] sm:$0xff]
    %v123 = vld [vmem:[#allocation2 + $0x288] sm:$0xff]
    %v124 = vld [vmem:[#allocation2 + $0x298] sm:$0xff]
    %v125 = vld [vmem:[#allocation2 + $0x2a8] sm:$0xff]
    %v126 = vld [vmem:[#allocation2 + $0x2b0] sm:$0xff]
    %v127 = vld [vmem:[#allocation2 + $0x2c0] sm:$0xff]
    %v128 = vld [vmem:[#allocation2 + $0x2d0] sm:$0xff]
    %v129 = vld [vmem:[#allocation2 + $0x2e0] sm:$0xff]
    %v130 = vld [vmem:[#allocation2 + $0x2f0] sm:$0xff]
    %v131 = vld [vmem:[#allocation2 + $0x300] sm:$0xff]
    %v132 = vpack.c.bf16 %v127, %v126
    %v133 = vpack.c.bf16 %v129, %v128
    %v134 = vpack.c.bf16 %v131, %v130
    %v135 = vld [vmem:[#allocation2 + $0x310] sm:$0xff]
    %v136 = vld [vmem:[#allocation2 + $0x320] sm:$0xff]
    %v137 = vpack.c.bf16 %v136, %v135
    %v138 = vld [vmem:[%s0] sm:$0xff]
    %v139 = vld [vmem:[%s0 + $0x8] sm:$0xff]
    %v140 = vld [vmem:[%s0 + $0x10] sm:$0xff]
    %v141 = vld [vmem:[%s0 + $0x18] sm:$0xff]
    %143 = vset.pattern.permute.xlu0 0
    %144 = vperm.xlu0 %143, %v138
    %v145 = vpop.permute.xlu0 %144
    %148 = vset.pattern.permute.xlu0 0
    %149 = vperm.xlu0 %148, %v139
    %v150 = vpop.permute.xlu0 %149
    %153 = vset.pattern.permute.xlu0 0
    %154 = vperm.xlu0 %153, %v140
    %v155 = vpop.permute.xlu0 %154
    %158 = vset.pattern.permute.xlu0 0
    %159 = vperm.xlu0 %158, %v141
    %v160 = vpop.permute.xlu0 %159
    %v162 = vlaneseq
    %v163 = vshrl.u32 %v162, 7
    %v164 = vsub.s32 0, %v163
    %v165 = vrot.slane %v30, %v164
    %v166 = vmul.f32 %v145, %v165
    %v167 = vmul.f32 %v150, %v165
    %v168 = vmul.f32 %v155, %v165
    %v169 = vmul.f32 %v160, %v165
    %170 = vset.pattern.permute.xlu0 1
    %171 = vperm.xlu0 %170, %v138
    %v172 = vpop.permute.xlu0 %171
    %174 = vset.pattern.permute.xlu0 1
    %175 = vperm.xlu0 %174, %v139
    %v176 = vpop.permute.xlu0 %175
    %178 = vset.pattern.permute.xlu0 1
    %179 = vperm.xlu0 %178, %v140
    %v180 = vpop.permute.xlu0 %179
    %182 = vset.pattern.permute.xlu0 1
    %183 = vperm.xlu0 %182, %v141
    %v184 = vpop.permute.xlu0 %183
    %v186 = vlaneseq
    %v187 = vshrl.u32 %v186, 7
    %v188 = vsub.s32 1, %v187
    %v189 = vrot.slane %v30, %v188
    %v190 = vmul.f32 %v172, %v189
    %v191 = vmul.f32 %v176, %v189
    %v192 = vmul.f32 %v180, %v189
    %v193 = vmul.f32 %v184, %v189
    %v194 = vadd.f32 %v166, %v190
    %v195 = vadd.f32 %v167, %v191
    %v196 = vadd.f32 %v168, %v192
    %v197 = vadd.f32 %v169, %v193
    %198 = vset.pattern.permute.xlu0 2
    %199 = vperm.xlu0 %198, %v138
    %v200 = vpop.permute.xlu0 %199
    %202 = vset.pattern.permute.xlu0 2
    %203 = vperm.xlu0 %202, %v139
    %v204 = vpop.permute.xlu0 %203
    %206 = vset.pattern.permute.xlu0 2
    %207 = vperm.xlu0 %206, %v140
    %v208 = vpop.permute.xlu0 %207
    %210 = vset.pattern.permute.xlu0 2
    %211 = vperm.xlu0 %210, %v141
    %v212 = vpop.permute.xlu0 %211
    %v214 = vlaneseq
    %v215 = vshrl.u32 %v214, 7
    %v216 = vsub.s32 2, %v215
    %v217 = vrot.slane %v30, %v216
    %v218 = vmul.f32 %v200, %v217
    %v219 = vmul.f32 %v204, %v217
    %v220 = vmul.f32 %v208, %v217
    %v221 = vmul.f32 %v212, %v217
    %v222 = vadd.f32 %v194, %v218
    %v223 = vadd.f32 %v195, %v219
    %v224 = vadd.f32 %v196, %v220
    %v225 = vadd.f32 %v197, %v221
    %v226 = vlaneseq
    %v227 = vshrl.u32 %v226, 7
    %v228 = vsub.s32 3, %v227
    %v229 = vrot.slane %v30, %v228
    %v230 = vadd.f32 %v222, %v229
    %v231 = vadd.f32 %v223, %v229
    %v232 = vadd.f32 %v224, %v229
    %v233 = vadd.f32 %v225, %v229
    %v234 = vmax.f32 %v230, 0.0
    %v235 = vmax.f32 %v231, 0.0
    %v236 = vmax.f32 %v232, 0.0
    %v237 = vmax.f32 %v233, 0.0
    %v238 = vpack.c.bf16 %v235, %v234
    %v239 = vpack.c.bf16 %v237, %v236
    %vm240 = vcmask 261120
    %v242 = vsel %vm240, %v238, 0
    %v245 = vsel %vm240, %v239, 0
    %247 = vmatprep.subr.bf16.mxu0 0
    %248 = vmatpush1.bf16.msra.mxu0 %v35
    %249 = vmatprep.subr.bf16.mxu0 0
    %250 = vmatpush1.bf16.msra.mxu0 %v36
    %251 = vmatprep.subr.bf16.mxu0 0
    %252 = vmatpush1.bf16.msra.mxu0 0
    %253 = vmatprep.subr.bf16.mxu0 0
    %254 = vmatpush1.bf16.msra.mxu0 0
    %255 = vmatprep.subr.bf16.mxu0 0
    %256 = vmatpush1.bf16.msra.mxu0 0
    %257 = vmatprep.subr.bf16.mxu0 0
    %258 = vmatpush1.bf16.msra.mxu0 0
    %259 = vmatprep.subr.bf16.mxu0 0
    %260 = vmatpush1.bf16.msra.mxu0 0
    %261 = vmatprep.subr.bf16.mxu0 0
    %262 = vmatpush1.bf16.msra.mxu0 0
    %263 = vmatprep.subr.bf16.mxu0 0
    %264 = vmatpush1.bf16.msra.mxu0 0
    %265 = vmatprep.subr.bf16.mxu0 0
    %266 = vmatpush1.bf16.msra.mxu0 0
    %267 = vmatprep.subr.bf16.mxu0 0
    %268 = vmatpush1.bf16.msra.mxu0 0
    %269 = vmatprep.subr.bf16.mxu0 0
    %270 = vmatpush1.bf16.msra.mxu0 0
    %271 = vmatprep.subr.bf16.mxu0 0
    %272 = vmatpush1.bf16.msra.mxu0 0
    %273 = vmatprep.subr.bf16.mxu0 0
    %274 = vmatpush1.bf16.msra.mxu0 0
    %275 = vmatprep.subr.bf16.mxu0 0
    %276 = vmatpush1.bf16.msra.mxu0 0
    %277 = vmatprep.subr.bf16.mxu0 0
    %278 = vmatpush1.bf16.msra.mxu0 0
    %279 = vmatprep.mubr.bf16.mxu0 0
    %280 = vmatmul.mubr.bf16.gmra.mrb[0].mxu0 %v242
    %v281 = vpop.f32.mrb[0].mxu0
    %v282 = vadd.f32 %v37, %v281
    %v283 = vpop.f32.mrb[0].mxu0
    %v284 = vpop.f32.mrb[0].mxu0
    %v285 = vadd.f32 %v37, %v284
    %v286 = vpop.f32.mrb[0].mxu0
    %287 = vmatprep.mubr.bf16.mxu0 0
    %288 = vmatmul.mubr.bf16.gmra.mrb[0].mxu0 %v245
    %v289 = vpop.f32.mrb[0].mxu0
    %v290 = vpop.f32.mrb[0].mxu0
    %v291 = vpop.f32.mrb[0].mxu0
    %v292 = vpop.f32.mrb[0].mxu0
    %293 = vdwg.mxu0
    %v294 = vmax.f32 %v282, 0.0
    %v295 = vmax.f32 %v285, 0.0
    %v296 = vpack.c.bf16 %v295, %v294
    %vm297 = vcmask 523264
    %v299 = vsel %vm297, %v296, 0
    %301 = vmatprep.subr.bf16.mxu0 0
    %302 = vmatpush1.bf16.msra.mxu0 %v46
    %303 = vmatprep.subr.bf16.mxu0 0
    %304 = vmatpush1.bf16.msra.mxu0 %v47
    %305 = vmatprep.subr.bf16.mxu0 0
    %306 = vmatpush1.bf16.msra.mxu0 %v48
    %307 = vmatprep.subr.bf16.mxu0 0
    %308 = vmatpush1.bf16.msra.mxu0 %v49
    %309 = vmatprep.subr.bf16.mxu0 0
    %310 = vmatpush1.bf16.msra.mxu0 0
    %311 = vmatprep.subr.bf16.mxu0 0
    %312 = vmatpush1.bf16.msra.mxu0 0
    %313 = vmatprep.subr.bf16.mxu0 0
    %314 = vmatpush1.bf16.msra.mxu0 0
    %315 = vmatprep.subr.bf16.mxu0 0
    %316 = vmatpush1.bf16.msra.mxu0 0
    %317 = vmatprep.subr.bf16.mxu0 0
    %318 = vmatpush1.bf16.msra.mxu0 0
    %319 = vmatprep.subr.bf16.mxu0 0
    %320 = vmatpush1.bf16.msra.mxu0 0
    %321 = vmatprep.subr.bf16.mxu0 0
    %322 = vmatpush1.bf16.msra.mxu0 0
    %323 = vmatprep.subr.bf16.mxu0 0
    %324 = vmatpush1.bf16.msra.mxu0 0
    %325 = vmatprep.subr.bf16.mxu0 0
    %326 = vmatpush1.bf16.msra.mxu0 0
    %327 = vmatprep.subr.bf16.mxu0 0
    %328 = vmatpush1.bf16.msra.mxu0 0
    %329 = vmatprep.subr.bf16.mxu0 0
    %330 = vmatpush1.bf16.msra.mxu0 0
    %331 = vmatprep.subr.bf16.mxu0 0
    %332 = vmatpush1.bf16.msra.mxu0 0
    %333 = vmatprep.mubr.bf16.mxu0 0
    %334 = vmatmul.mubr.bf16.gmra.mrb[0].mxu0 %v299
    %v335 = vpop.f32.mrb[0].mxu0
    %v336 = vadd.f32 %v50, %v335
    %v337 = vpop.f32.mrb[0].mxu0
    %v338 = vpop.f32.mrb[0].mxu0
    %v339 = vadd.f32 %v50, %v338
    %v340 = vpop.f32.mrb[0].mxu0
    %341 = vdwg.mxu0
    %v342 = vmax.f32 %v336, 0.0
    %v343 = vmax.f32 %v339, 0.0
    %v344 = vmax.f32 %v342, %v343
    %v345 = vrot.slane %v344, 4
    %v346 = vmax.f32 %v344, %v345
    %v347 = vrot.slane %v346, 2
    %v348 = vmax.f32 %v346, %v347
    %v349 = vrot.slane %v348, 1
    %v350 = vmax.f32 %v348, %v349
    %s351 = scalar_lea.vmem %s0, 64
    %v352 = vld [vmem:[%s351] sm:$0xff]
    %v353 = vld [vmem:[%s351 + $0x8] sm:$0xff]
    %v354 = vld [vmem:[%s351 + $0x10] sm:$0xff]
    %v355 = vld [vmem:[%s351 + $0x18] sm:$0xff]
    %357 = vset.pattern.permute.xlu0 0
    %358 = vperm.xlu0 %357, %v352
    %v359 = vpop.permute.xlu0 %358
    %362 = vset.pattern.permute.xlu0 0
    %363 = vperm.xlu0 %362, %v353
    %v364 = vpop.permute.xlu0 %363
    %367 = vset.pattern.permute.xlu0 0
    %368 = vperm.xlu0 %367, %v354
    %v369 = vpop.permute.xlu0 %368
    %372 = vset.pattern.permute.xlu0 0
    %373 = vperm.xlu0 %372, %v355
    %v374 = vpop.permute.xlu0 %373
    %v376 = vmul.f32 %v359, %v165
    %v377 = vmul.f32 %v364, %v165
    %v378 = vmul.f32 %v369, %v165
    %v379 = vmul.f32 %v374, %v165
    %380 = vset.pattern.permute.xlu0 1
    %381 = vperm.xlu0 %380, %v352
    %v382 = vpop.permute.xlu0 %381
    %384 = vset.pattern.permute.xlu0 1
    %385 = vperm.xlu0 %384, %v353
    %v386 = vpop.permute.xlu0 %385
    %388 = vset.pattern.permute.xlu0 1
    %389 = vperm.xlu0 %388, %v354
    %v390 = vpop.permute.xlu0 %389
    %392 = vset.pattern.permute.xlu0 1
    %393 = vperm.xlu0 %392, %v355
    %v394 = vpop.permute.xlu0 %393
    %v396 = vmul.f32 %v382, %v189
    %v397 = vmul.f32 %v386, %v189
    %v398 = vmul.f32 %v390, %v189
    %v399 = vmul.f32 %v394, %v189
    %v400 = vadd.f32 %v376, %v396
    %v401 = vadd.f32 %v377, %v397
    %v402 = vadd.f32 %v378, %v398
    %v403 = vadd.f32 %v379, %v399
    %404 = vset.pattern.permute.xlu0 2
    %405 = vperm.xlu0 %404, %v352
    %v406 = vpop.permute.xlu0 %405
    %408 = vset.pattern.permute.xlu0 2
    %409 = vperm.xlu0 %408, %v353
    %v410 = vpop.permute.xlu0 %409
    %412 = vset.pattern.permute.xlu0 2
    %413 = vperm.xlu0 %412, %v354
    %v414 = vpop.permute.xlu0 %413
    %416 = vset.pattern.permute.xlu0 2
    %417 = vperm.xlu0 %416, %v355
    %v418 = vpop.permute.xlu0 %417
    %v420 = vmul.f32 %v406, %v217
    %v421 = vmul.f32 %v410, %v217
    %v422 = vmul.f32 %v414, %v217
    %v423 = vmul.f32 %v418, %v217
    %v424 = vadd.f32 %v400, %v420
    %v425 = vadd.f32 %v401, %v421
    %v426 = vadd.f32 %v402, %v422
    %v427 = vadd.f32 %v403, %v423
    %v428 = vadd.f32 %v424, %v229
    %v429 = vadd.f32 %v425, %v229
    %v430 = vadd.f32 %v426, %v229
    %v431 = vadd.f32 %v427, %v229
    %v432 = vmax.f32 %v428, 0.0
    %v433 = vmax.f32 %v429, 0.0
    %v434 = vmax.f32 %v430, 0.0
    %v435 = vmax.f32 %v431, 0.0
    %v436 = vpack.c.bf16 %v433, %v432
    %v437 = vpack.c.bf16 %v435, %v434
    %v439 = vsel %vm240, %v436, 0
    %v442 = vsel %vm240, %v437, 0
    %444 = vmatprep.subr.bf16.mxu0 0
    %445 = vmatpush1.bf16.msra.mxu0 %v35
    %446 = vmatprep.subr.bf16.mxu0 0
    %447 = vmatpush1.bf16.msra.mxu0 %v36
    %448 = vmatprep.subr.bf16.mxu0 0
    %449 = vmatpush1.bf16.msra.mxu0 0
    %450 = vmatprep.subr.bf16.mxu0 0
    %451 = vmatpush1.bf16.msra.mxu0 0
    %452 = vmatprep.subr.bf16.mxu0 0
    %453 = vmatpush1.bf16.msra.mxu0 0
    %454 = vmatprep.subr.bf16.mxu0 0
    %455 = vmatpush1.bf16.msra.mxu0 0
    %456 = vmatprep.subr.bf16.mxu0 0
    %457 = vmatpush1.bf16.msra.mxu0 0
    %458 = vmatprep.subr.bf16.mxu0 0
    %459 = vmatpush1.bf16.msra.mxu0 0
    %460 = vmatprep.subr.bf16.mxu0 0
    %461 = vmatpush1.bf16.msra.mxu0 0
    %462 = vmatprep.subr.bf16.mxu0 0
    %463 = vmatpush1.bf16.msra.mxu0 0
    %464 = vmatprep.subr.bf16.mxu0 0
    %465 = vmatpush1.bf16.msra.mxu0 0
    %466 = vmatprep.subr.bf16.mxu0 0
    %467 = vmatpush1.bf16.msra.mxu0 0
    %468 = vmatprep.subr.bf16.mxu0 0
    %469 = vmatpush1.bf16.msra.mxu0 0
    %470 = vmatprep.subr.bf16.mxu0 0
    %471 = vmatpush1.bf16.msra.mxu0 0
    %472 = vmatprep.subr.bf16.mxu0 0
    %473 = vmatpush1.bf16.msra.mxu0 0
    %474 = vmatprep.subr.bf16.mxu0 0
    %475 = vmatpush1.bf16.msra.mxu0 0
    %476 = vmatprep.mubr.bf16.mxu0 0
    %477 = vmatmul.mubr.bf16.gmra.mrb[0].mxu0 %v439
    %v478 = vpop.f32.mrb[0].mxu0
    %v479 = vadd.f32 %v37, %v478
    %v480 = vpop.f32.mrb[0].mxu0
    %v481 = vpop.f32.mrb[0].mxu0
    %v482 = vadd.f32 %v37, %v481
    %v483 = vpop.f32.mrb[0].mxu0
    %484 = vmatprep.mubr.bf16.mxu0 0
    %485 = vmatmul.mubr.bf16.gmra.mrb[0].mxu0 %v442
    %v486 = vpop.f32.mrb[0].mxu0
    %v487 = vpop.f32.mrb[0].mxu0
    %v488 = vpop.f32.mrb[0].mxu0
    %v489 = vpop.f32.mrb[0].mxu0
    %490 = vdwg.mxu0
    %v491 = vmax.f32 %v479, 0.0
    %v492 = vmax.f32 %v482, 0.0
    %v493 = vpack.c.bf16 %v492, %v491
    %v495 = vsel %vm297, %v493, 0
    %497 = vmatprep.subr.bf16.mxu0 0
    %498 = vmatpush1.bf16.msra.mxu0 %v46
    %499 = vmatprep.subr.bf16.mxu0 0
    %500 = vmatpush1.bf16.msra.mxu0 %v47
    %501 = vmatprep.subr.bf16.mxu0 0
    %502 = vmatpush1.bf16.msra.mxu0 %v48
    %503 = vmatprep.subr.bf16.mxu0 0
    %504 = vmatpush1.bf16.msra.mxu0 %v49
    %505 = vmatprep.subr.bf16.mxu0 0
    %506 = vmatpush1.bf16.msra.mxu0 0
    %507 = vmatprep.subr.bf16.mxu0 0
    %508 = vmatpush1.bf16.msra.mxu0 0
    %509 = vmatprep.subr.bf16.mxu0 0
    %510 = vmatpush1.bf16.msra.mxu0 0
    %511 = vmatprep.subr.bf16.mxu0 0
    %512 = vmatpush1.bf16.msra.mxu0 0
    %513 = vmatprep.subr.bf16.mxu0 0
    %514 = vmatpush1.bf16.msra.mxu0 0
    %515 = vmatprep.subr.bf16.mxu0 0
    %516 = vmatpush1.bf16.msra.mxu0 0
    %517 = vmatprep.subr.bf16.mxu0 0
    %518 = vmatpush1.bf16.msra.mxu0 0
    %519 = vmatprep.subr.bf16.mxu0 0
    %520 = vmatpush1.bf16.msra.mxu0 0
    %521 = vmatprep.subr.bf16.mxu0 0
    %522 = vmatpush1.bf16.msra.mxu0 0
    %523 = vmatprep.subr.bf16.mxu0 0
    %524 = vmatpush1.bf16.msra.mxu0 0
    %525 = vmatprep.subr.bf16.mxu0 0
    %526 = vmatpush1.bf16.msra.mxu0 0
    %527 = vmatprep.subr.bf16.mxu0 0
    %528 = vmatpush1.bf16.msra.mxu0 0
    %529 = vmatprep.mubr.bf16.mxu0 0
    %530 = vmatmul.mubr.bf16.gmra.mrb[0].mxu0 %v495
    %v531 = vpop.f32.mrb[0].mxu0
    %v532 = vadd.f32 %v50, %v531
    %v533 = vpop.f32.mrb[0].mxu0
    %v534 = vpop.f32.mrb[0].mxu0
    %v535 = vadd.f32 %v50, %v534
    %v536 = vpop.f32.mrb[0].mxu0
    %537 = vdwg.mxu0
    %v538 = vmax.f32 %v532, 0.0
    %v539 = vmax.f32 %v535, 0.0
    %v540 = vmax.f32 %v538, %v539
    %v541 = vrot.slane %v540, 4
    %v542 = vmax.f32 %v540, %v541
    %v543 = vrot.slane %v542, 2
    %v544 = vmax.f32 %v542, %v543
    %v545 = vrot.slane %v544, 1
    %v546 = vmax.f32 %v544, %v545
    %vm547 = vcmask 1040384
    %v548 = vsel %vm547, %v350, %v546
    %v549 = vpack.c.bf16 %v548, %v548
    %v551 = vlaneseq
    %v552 = vshrl.u32 %v551, 7
    %v553 = vsub.s32 0, %v552
    %v554 = vrot.slane %v100, %v553
    %v555 = vlaneseq
    %v556 = vshrl.u32 %v555, 7
    %v557 = vsub.s32 1, %v556
    %v558 = vrot.slane %v100, %v557
    %561 = vmatprep.subr.bf16.mxu0 %v84
    %562 = vmatpush1.bf16.msra.mxu0 %v83
    %563 = vmatprep.subr.bf16.mxu0 %v86
    %564 = vmatpush1.bf16.msra.mxu0 %v85
    %565 = vmatprep.subr.bf16.mxu0 %v88
    %566 = vmatpush1.bf16.msra.mxu0 %v87
    %567 = vmatprep.subr.bf16.mxu0 %v90
    %568 = vmatpush1.bf16.msra.mxu0 %v89
    %569 = vmatprep.subr.bf16.mxu0 %v92
    %570 = vmatpush1.bf16.msra.mxu0 %v91
    %571 = vmatprep.subr.bf16.mxu0 %v94
    %572 = vmatpush1.bf16.msra.mxu0 %v93
    %573 = vmatprep.subr.bf16.mxu0 %v96
    %574 = vmatpush1.bf16.msra.mxu0 %v95
    %575 = vmatprep.subr.bf16.mxu0 %v98
    %576 = vmatpush1.bf16.msra.mxu0 %v97
    %577 = vmatprep.subr.bf16.mxu0 0
    %578 = vmatpush1.bf16.msra.mxu0 0
    %579 = vmatprep.subr.bf16.mxu0 0
    %580 = vmatpush1.bf16.msra.mxu0 0
    %581 = vmatprep.subr.bf16.mxu0 0
    %582 = vmatpush1.bf16.msra.mxu0 0
    %583 = vmatprep.subr.bf16.mxu0 0
    %584 = vmatpush1.bf16.msra.mxu0 0
    %585 = vmatprep.subr.bf16.mxu0 0
    %586 = vmatpush1.bf16.msra.mxu0 0
    %587 = vmatprep.subr.bf16.mxu0 0
    %588 = vmatpush1.bf16.msra.mxu0 0
    %589 = vmatprep.subr.bf16.mxu0 0
    %590 = vmatpush1.bf16.msra.mxu0 0
    %591 = vmatprep.subr.bf16.mxu0 0
    %592 = vmatpush1.bf16.msra.mxu0 0
    %593 = vmatprep.mubr.bf16.mxu0 0
    %594 = vmatmul.mubr.bf16.gmra.mrb[0].mxu0 %v549
    %v595 = vpop.f32.mrb[0].mxu0
    %v596 = vadd.f32 %v554, %v595
    %v597 = vpop.f32.mrb[0].mxu0
    %v598 = vadd.f32 %v558, %v597
    %v599 = vpop.f32.mrb[0].mxu0
    %v600 = vpop.f32.mrb[0].mxu0
    %601 = vdwg.mxu0
    %v602 = vmul.f32 %v598, 0.5
    %v603 = vmul.f32 %v602, 1.442695
    %v604 = vpow.pop %v603
    %v605 = vld [vmem:[%s1] sm:$0x3]
    %v606 = vmul.f32 %v605, %v604
    %v607 = vadd.f32 %v606, %v596
    %v608 = vlaneseq
    %v609 = vshrl.u32 %v608, 7
    %v610 = vsub.s32 0, %v609
    %v611 = vrot.slane %v607, %v610
    %v612 = vmul.f32 %v101, %v611
    %v613 = vmul.f32 %v102, %v611
    %v614 = vlaneseq
    %v615 = vshrl.u32 %v614, 7
    %v616 = vsub.s32 1, %v615
    %v617 = vrot.slane %v607, %v616
    %v618 = vmul.f32 %v101, %v617
    %v619 = vmul.f32 %v102, %v617
    %v620 = vpack.c.bf16 %v613, %v612
    %v621 = vpack.c.bf16 %v619, %v618
    %623 = vset.pattern.permute.xlu0 0
    %624 = vperm.xlu0 %623, %v117
    %v625 = vpop.permute.xlu0 %624
    %628 = vset.pattern.permute.xlu0 0
    %629 = vperm.xlu0 %628, %v118
    %v630 = vpop.permute.xlu0 %629
    %633 = vset.pattern.permute.xlu0 0
    %634 = vperm.xlu0 %633, %v119
    %v635 = vpop.permute.xlu0 %634
    %638 = vset.pattern.permute.xlu0 0
    %639 = vperm.xlu0 %638, %v120
    %v640 = vpop.permute.xlu0 %639
    %643 = vset.pattern.permute.xlu0 0
    %644 = vperm.xlu0 %643, %v121
    %v645 = vpop.permute.xlu0 %644
    %648 = vset.pattern.permute.xlu0 0
    %649 = vperm.xlu0 %648, %v122
    %v650 = vpop.permute.xlu0 %649
    %653 = vset.pattern.permute.xlu0 0
    %654 = vperm.xlu0 %653, %v123
    %v655 = vpop.permute.xlu0 %654
    %658 = vset.pattern.permute.xlu0 0
    %659 = vperm.xlu0 %658, %v124
    %v660 = vpop.permute.xlu0 %659
    %663 = vset.pattern.permute.xlu0 0
    %664 = vperm.xlu0 %663, %v125
    %v665 = vpop.permute.xlu0 %664
    %667 = vmatprep.subr.bf16.mxu0 0
    %668 = vmatpush1.bf16.xpose.msra.mxu0 %v620
    %669 = vmatprep.subr.bf16.mxu0 0
    %670 = vmatpush1.bf16.xpose.msra.mxu0 %v621
    %671 = vmatprep.subr.bf16.mxu0 0
    %672 = vmatpush1.bf16.xpose.msra.mxu0 0
    %673 = vmatprep.subr.bf16.mxu0 0
    %674 = vmatpush1.bf16.xpose.msra.mxu0 0
    %675 = vmatprep.subr.bf16.mxu0 0
    %676 = vmatpush1.bf16.xpose.msra.mxu0 0
    %677 = vmatprep.subr.bf16.mxu0 0
    %678 = vmatpush1.bf16.xpose.msra.mxu0 0
    %679 = vmatprep.subr.bf16.mxu0 0
    %680 = vmatpush1.bf16.xpose.msra.mxu0 0
    %681 = vmatprep.subr.bf16.mxu0 0
    %682 = vmatpush1.bf16.xpose.msra.mxu0 0
    %683 = vmatprep.subr.bf16.mxu0 0
    %684 = vmatpush1.bf16.xpose.msra.mxu0 0
    %685 = vmatprep.subr.bf16.mxu0 0
    %686 = vmatpush1.bf16.xpose.msra.mxu0 0
    %687 = vmatprep.subr.bf16.mxu0 0
    %688 = vmatpush1.bf16.xpose.msra.mxu0 0
    %689 = vmatprep.subr.bf16.mxu0 0
    %690 = vmatpush1.bf16.xpose.msra.mxu0 0
    %691 = vmatprep.subr.bf16.mxu0 0
    %692 = vmatpush1.bf16.xpose.msra.mxu0 0
    %693 = vmatprep.subr.bf16.mxu0 0
    %694 = vmatpush1.bf16.xpose.msra.mxu0 0
    %695 = vmatprep.subr.bf16.mxu0 0
    %696 = vmatpush1.bf16.xpose.msra.mxu0 0
    %697 = vmatprep.subr.bf16.mxu0 0
    %698 = vmatpush1.bf16.xpose.msra.mxu0 0
    %699 = vmatprep.mubr.bf16.mxu0 0
    %700 = vmatmul.mubr.bf16.gmra.mrb[0].mxu0 %v112
    %v701 = vpop.f32.mrb[0].mxu0
    %v702 = vadd.f32 %v625, %v701
    %v703 = vpop.f32.mrb[0].mxu0
    %v704 = vpop.f32.mrb[0].mxu0
    %v705 = vadd.f32 %v630, %v704
    %v706 = vpop.f32.mrb[0].mxu0
    %707 = vmatprep.mubr.bf16.mxu0 0
    %708 = vmatmul.mubr.bf16.gmra.mrb[0].mxu0 %v113
    %v709 = vpop.f32.mrb[0].mxu0
    %v710 = vadd.f32 %v635, %v709
    %v711 = vpop.f32.mrb[0].mxu0
    %v712 = vpop.f32.mrb[0].mxu0
    %v713 = vadd.f32 %v640, %v712
    %v714 = vpop.f32.mrb[0].mxu0
    %715 = vmatprep.mubr.bf16.mxu0 0
    %716 = vmatmul.mubr.bf16.gmra.mrb[0].mxu0 %v114
    %v717 = vpop.f32.mrb[0].mxu0
    %v718 = vadd.f32 %v645, %v717
    %v719 = vpop.f32.mrb[0].mxu0
    %v720 = vpop.f32.mrb[0].mxu0
    %v721 = vadd.f32 %v650, %v720
    %v722 = vpop.f32.mrb[0].mxu0
    %723 = vmatprep.mubr.bf16.mxu0 0
    %724 = vmatmul.mubr.bf16.gmra.mrb[0].mxu0 %v115
    %v725 = vpop.f32.mrb[0].mxu0
    %v726 = vadd.f32 %v655, %v725
    %v727 = vpop.f32.mrb[0].mxu0
    %v728 = vpop.f32.mrb[0].mxu0
    %v729 = vadd.f32 %v660, %v728
    %v730 = vpop.f32.mrb[0].mxu0
    %731 = vmatprep.mubr.bf16.mxu0 0
    %732 = vmatmul.mubr.bf16.gmra.mrb[0].mxu0 %v116
    %v733 = vpop.f32.mrb[0].mxu0
    %v734 = vadd.f32 %v665, %v733
    %v735 = vpop.f32.mrb[0].mxu0
    %v736 = vpop.f32.mrb[0].mxu0
    %v737 = vpop.f32.mrb[0].mxu0
    %738 = vdwg.mxu0
    %v739 = vmax.f32 %v702, 0.0
    %v740 = vmax.f32 %v705, 0.0
    %v741 = vmax.f32 %v710, 0.0
    %v742 = vmax.f32 %v713, 0.0
    %v743 = vmax.f32 %v718, 0.0
    %v744 = vmax.f32 %v721, 0.0
    %v745 = vmax.f32 %v726, 0.0
    %v746 = vmax.f32 %v729, 0.0
    %v747 = vpack.c.bf16 %v740, %v739
    %v748 = vpack.c.bf16 %v742, %v741
    %v749 = vpack.c.bf16 %v744, %v743
    %v750 = vpack.c.bf16 %v746, %v745
    %752 = vset.pattern.permute.xlu0 64
    %753 = vperm.xlu0 %752, %v126
    %v754 = vpop.permute.xlu0 %753
    %757 = vset.pattern.permute.xlu0 64
    %758 = vperm.xlu0 %757, %v127
    %v759 = vpop.permute.xlu0 %758
    %762 = vset.pattern.permute.xlu0 64
    %763 = vperm.xlu0 %762, %v128
    %v764 = vpop.permute.xlu0 %763
    %767 = vset.pattern.permute.xlu0 64
    %768 = vperm.xlu0 %767, %v129
    %v769 = vpop.permute.xlu0 %768
    %772 = vset.pattern.permute.xlu0 64
    %773 = vperm.xlu0 %772, %v130
    %v774 = vpop.permute.xlu0 %773
    %777 = vset.pattern.permute.xlu0 64
    %778 = vperm.xlu0 %777, %v131
    %v779 = vpop.permute.xlu0 %778
    %v782 = vsel %vm297, %v132, 0
    %v785 = vsel %vm297, %v133, 0
    %v788 = vsel %vm297, %v134, 0
    %790 = vmatprep.subr.bf16.mxu0 0
    %791 = vmatpush1.bf16.msra.mxu0 %v747
    %792 = vmatprep.subr.bf16.mxu0 0
    %793 = vmatpush1.bf16.msra.mxu0 %v748
    %794 = vmatprep.subr.bf16.mxu0 0
    %795 = vmatpush1.bf16.msra.mxu0 %v749
    %796 = vmatprep.subr.bf16.mxu0 0
    %797 = vmatpush1.bf16.msra.mxu0 %v750
    %798 = vmatprep.subr.bf16.mxu0 0
    %799 = vmatpush1.bf16.msra.mxu0 0
    %800 = vmatprep.subr.bf16.mxu0 0
    %801 = vmatpush1.bf16.msra.mxu0 0
    %802 = vmatprep.subr.bf16.mxu0 0
    %803 = vmatpush1.bf16.msra.mxu0 0
    %804 = vmatprep.subr.bf16.mxu0 0
    %805 = vmatpush1.bf16.msra.mxu0 0
    %806 = vmatprep.subr.bf16.mxu0 0
    %807 = vmatpush1.bf16.msra.mxu0 0
    %808 = vmatprep.subr.bf16.mxu0 0
    %809 = vmatpush1.bf16.msra.mxu0 0
    %810 = vmatprep.subr.bf16.mxu0 0
    %811 = vmatpush1.bf16.msra.mxu0 0
    %812 = vmatprep.subr.bf16.mxu0 0
    %813 = vmatpush1.bf16.msra.mxu0 0
    %814 = vmatprep.subr.bf16.mxu0 0
    %815 = vmatpush1.bf16.msra.mxu0 0
    %816 = vmatprep.subr.bf16.mxu0 0
    %817 = vmatpush1.bf16.msra.mxu0 0
    %818 = vmatprep.subr.bf16.mxu0 0
    %819 = vmatpush1.bf16.msra.mxu0 0
    %820 = vmatprep.subr.bf16.mxu0 0
    %821 = vmatpush1.bf16.msra.mxu0 0
    %822 = vmatprep.mubr.bf16.mxu0 0
    %823 = vmatmul.mubr.bf16.gmra.mrb[0].mxu0 %v782
    %v824 = vpop.f32.mrb[0].mxu0
    %v825 = vadd.f32 %v754, %v824
    %v826 = vpop.f32.mrb[0].mxu0
    %v827 = vpop.f32.mrb[0].mxu0
    %v828 = vadd.f32 %v759, %v827
    %v829 = vpop.f32.mrb[0].mxu0
    %830 = vmatprep.mubr.bf16.mxu0 0
    %831 = vmatmul.mubr.bf16.gmra.mrb[0].mxu0 %v785
    %v832 = vpop.f32.mrb[0].mxu0
    %v833 = vadd.f32 %v764, %v832
    %v834 = vpop.f32.mrb[0].mxu0
    %v835 = vpop.f32.mrb[0].mxu0
    %v836 = vadd.f32 %v769, %v835
    %v837 = vpop.f32.mrb[0].mxu0
    %838 = vmatprep.mubr.bf16.mxu0 0
    %839 = vmatmul.mubr.bf16.gmra.mrb[0].mxu0 %v788
    %v840 = vpop.f32.mrb[0].mxu0
    %v841 = vadd.f32 %v774, %v840
    %v842 = vpop.f32.mrb[0].mxu0
    %v843 = vpop.f32.mrb[0].mxu0
    %v844 = vadd.f32 %v779, %v843
    %v845 = vpop.f32.mrb[0].mxu0
    %846 = vdwg.mxu0
    %v847 = vmax.f32 %v825, 0.0
    %v848 = vmax.f32 %v828, 0.0
    %v849 = vmax.f32 %v833, 0.0
    %v850 = vmax.f32 %v836, 0.0
    %v851 = vpack.c.bf16 %v848, %v847
    %v852 = vpack.c.bf16 %v850, %v849
    %v853 = vadd.f32 %v734, %v841
    %v854 = vadd.f32 %v734, %v844
    %v856 = vsel %vm240, %v137, 0
    %858 = vmatprep.subr.bf16.mxu0 0
    %859 = vmatpush1.bf16.msra.mxu0 %v851
    %860 = vmatprep.subr.bf16.mxu0 0
    %861 = vmatpush1.bf16.msra.mxu0 %v852
    %862 = vmatprep.subr.bf16.mxu0 0
    %863 = vmatpush1.bf16.msra.mxu0 0
    %864 = vmatprep.subr.bf16.mxu0 0
    %865 = vmatpush1.bf16.msra.mxu0 0
    %866 = vmatprep.subr.bf16.mxu0 0
    %867 = vmatpush1.bf16.msra.mxu0 0
    %868 = vmatprep.subr.bf16.mxu0 0
    %869 = vmatpush1.bf16.msra.mxu0 0
    %870 = vmatprep.subr.bf16.mxu0 0
    %871 = vmatpush1.bf16.msra.mxu0 0
    %872 = vmatprep.subr.bf16.mxu0 0
    %873 = vmatpush1.bf16.msra.mxu0 0
    %874 = vmatprep.subr.bf16.mxu0 0
    %875 = vmatpush1.bf16.msra.mxu0 0
    %876 = vmatprep.subr.bf16.mxu0 0
    %877 = vmatpush1.bf16.msra.mxu0 0
    %878 = vmatprep.subr.bf16.mxu0 0
    %879 = vmatpush1.bf16.msra.mxu0 0
    %880 = vmatprep.subr.bf16.mxu0 0
    %881 = vmatpush1.bf16.msra.mxu0 0
    %882 = vmatprep.subr.bf16.mxu0 0
    %883 = vmatpush1.bf16.msra.mxu0 0
    %884 = vmatprep.subr.bf16.mxu0 0
    %885 = vmatpush1.bf16.msra.mxu0 0
    %886 = vmatprep.subr.bf16.mxu0 0
    %887 = vmatpush1.bf16.msra.mxu0 0
    %888 = vmatprep.subr.bf16.mxu0 0
    %889 = vmatpush1.bf16.msra.mxu0 0
    %890 = vmatprep.mubr.bf16.mxu0 0
    %891 = vmatmul.mubr.bf16.gmra.mrb[0].mxu0 %v856
    %v892 = vpop.f32.mrb[0].mxu0
    %v893 = vadd.f32 0.0, %v892
    %v894 = vpop.f32.mrb[0].mxu0
    %v895 = vpop.f32.mrb[0].mxu0
    %v896 = vadd.f32 0.0, %v895
    %v897 = vpop.f32.mrb[0].mxu0
    %898 = vdwg.mxu0
    %v899 = vadd.f32 %v853, %v893
    %v900 = vadd.f32 %v854, %v893
    %v901 = vadd.f32 %v853, %v896
    %v902 = vadd.f32 %v854, %v896
    %904 = vrot.lane.b32.xlu0 %v900, 32
    %v905 = vpop.permute.xlu0 %904
    %908 = vrot.lane.b32.xlu0 %v901, 64
    %v909 = vpop.permute.xlu0 %908
    %912 = vrot.lane.b32.xlu0 %v902, 96
    %v913 = vpop.permute.xlu0 %912
    %916 = vrot.lane.b32.xlu0 %v854, 32
    %v917 = vpop.permute.xlu0 %916
    %920 = vrot.lane.b32.xlu0 %v734, 64
    %v921 = vpop.permute.xlu0 %920
    %v923 = vsel %vm240, %v899, %v905
    %v924 = vsel %vm297, %v923, %v909
    %vm925 = vcmask 785408
    %v926 = vsel %vm925, %v924, %v913
    %v927 = vsel %vm240, %v853, %v917
    %v928 = vsel %vm297, %v927, %v921
    %v929 = vsel %vm925, %v928, 0.0
    %930 = vst [vmem:[#allocation5] sm:$0x3] %v596
    %931 = vst [vmem:[#allocation5 + $0x8] sm:$0x3] %v598
    %v934 = vrot.slane %v926, 6
    %v935 = vrot.slane %v929, 6
    %938 = vst [vmem:[#allocation5] sm:$0x1c] %v934
    %939 = vst [vmem:[#allocation5 + $0x8] sm:$0x1c] %v935
    %940 = vst [vmem:[#allocation5] sm:$0xe0] 0.0
    %941 = vst [vmem:[#allocation5 + $0x8] sm:$0xe0] 0.0
    // Predicated region
    $region18: #{tpu_custom_call.1} parent=1 // pred_check
      _
    $region19: #{tpu_custom_call.1} parent=1 // pred_check_branch
      %943 = sbr.rel (0) target = $region21
    $region20: #{tpu_custom_call.1} parent=1 // pred_region
      %s945 = ssub.s32 256, 256
      %946 = vsyncadd [#allocation4], %s945
      %s948 = sshll.u32 [#allocation5], 4
      %s949 = int_to_ptr.vmem [resolvable:$true] %s948
      %951 = dma.vmem_to_hbm [thread:$0]  %s949, 256, %s3, [#allocation4]
    $region21: #{tpu_custom_call.1} parent=1 // pred_fallthru
      _
    // Predicated region
    $region22: #{tpu_custom_call.1} parent=1 // pred_check
      _
    $region23: #{tpu_custom_call.1} parent=1 // pred_check_branch
      %953 = sbr.rel (0) target = $region25
    $region24: #{tpu_custom_call.1} parent=1 // pred_region
      %954 = dma.done [#allocation4], 256
    $region25: #{tpu_custom_call.1} parent=1 // pred_fallthru
      _
    %955 = vsyncpa [#allocation3], 1
    %956 = vsyncpa [#allocation4], 1

</llo_original>
